<compile_context>
chip_gen: v5e
topology: v5e:2x2
jax: 0.10.0
libtpu: 0.0.40
codegen_flags: <defaults>
</compile_context>

<pallas_src>
import functools

import jax
import jax.numpy as jnp
from jax.experimental import pallas as pl
from jax.experimental.pallas import tpu as pltpu

F = 16                     # nn.Linear(16, 16)
LANES = 128                # TPU lane width
PACK = LANES // F          # 8 logical rows per packed 128-lane row
ROW_ALIGN = PACK * 8       # 64 logical rows -> packed block is (8k, 128)
DEFAULT_TB_ROWS = 131072   # logical-rows cap per grid step (8 MiB f32 block)
MIN_GRID_STEPS = 4         # keep >=2 (ideally 4) steps so both v7x TCs get work


def _round_up(n, m):
    return (n + m - 1) // m * m


def _vmem_budget_bytes():
    """~75% of physical VMEM (v5e/v6e: 128 MiB, v7x: 64 MiB), safe fallback."""
    try:
        cap = int(pltpu.get_tpu_info().vmem_capacity_bytes)
    except Exception:
        cap = 64 << 20
    return max(16 << 20, (cap * 3) // 4)


_VMEM_BUDGET = _vmem_budget_bytes()
# The pipeline holds ~7 block-sized f32 buffers at peak (x + out double-buffered
# = 4, plus h / pre-store y / matmul scratch inside the body); cap the block so
# the whole working set fits the budget with margin.
_MAX_TB8 = max(8, ((_VMEM_BUDGET // 8) // (LANES * 4)) // 8 * 8)
_MAX_TB_ROWS = _MAX_TB8 * PACK


def mlp_kernel(xp_ref, w1_ref, b1_ref, w2_ref, b2_ref, op_ref):
    # xp_ref: (tb8, 128) lane-packed rows; w*_ref: (128, 128) block-diagonal
    # kron(I_8, W.T); b*_ref: (1, 128) tiled bias.  All compute stays in f32.
    xp = xp_ref[...]
    h = jnp.dot(xp, w1_ref[...], preferred_element_type=jnp.float32) + b1_ref[...]
    h = jnp.maximum(h, 0.0)
    y = jnp.dot(h, w2_ref[...], preferred_element_type=jnp.float32) + b2_ref[...]
    op_ref[...] = y.astype(op_ref.dtype)   # lane-dense, unmasked store


def prepare_params(w1, b1, w2, b2):
    """One-time parameter prep (hoisted out of the per-call path).

    w1, w2 are in PyTorch (out_features, in_features) layout; b1, b2 are [16].
    Returns 128x128 block-diagonal weights and [1,128] tiled biases matching
    the lane-packed activation layout.
    """
    eye = jnp.eye(PACK, dtype=w1.dtype)
    w1_blk = jnp.kron(eye, w1.T)                      # (128, 128)
    w2_blk = jnp.kron(eye, w2.T)                      # (128, 128)
    b1_blk = jnp.tile(b1, PACK).reshape(1, LANES)     # (1, 128)
    b2_blk = jnp.tile(b2, PACK).reshape(1, LANES)     # (1, 128)
    return w1_blk, b1_blk, w2_blk, b2_blk


@functools.partial(jax.jit, static_argnames=("tb_rows",))
def dummy_model_forward(x, w1_blk, b1_blk, w2_blk, b2_blk, *,
                        tb_rows=DEFAULT_TB_ROWS):
    """x: [B, 16] f32.  Params from prepare_params().  Returns [B, 16]."""
    B, f = x.shape
    assert f == F, "DummyModelNoConfig expects 16 input features"

    # Pad only to the 64-row packing alignment (<=63 extra rows), never to a
    # full tile; the last grid block may be partial instead.
    Bp = _round_up(B, ROW_ALIGN)
    if Bp != B:
        x = jnp.pad(x, ((0, Bp - B), (0, 0)))

    # Tile size: as large as the VMEM budget allows, but split the batch into
    # at least MIN_GRID_STEPS grid steps ("parallel" only helps v7x's 2 TCs if
    # there are >=2 iterations to shard).
    per_step = _round_up(pl.cdiv(Bp, MIN_GRID_STEPS), ROW_ALIGN)
    tb_rows = max(ROW_ALIGN,
                  min(_round_up(tb_rows, ROW_ALIGN), _MAX_TB_ROWS, per_step))
    tb8 = tb_rows // PACK                              # packed rows per block

    xp = x.reshape(Bp // PACK, LANES)                  # free contiguous reshape
    n_packed = Bp // PACK
    grid = (pl.cdiv(n_packed, tb8),)                   # last block may be partial

    # VMEM budget: x + out double-buffered, ~3 block-sized in-kernel temps
    # (h, pre-store y, f32 matmul scratch), plus the grid-invariant
    # weight/bias blocks, with headroom, clamped to the per-chip budget.
    itemsize = jnp.dtype(x.dtype).itemsize
    block_bytes = tb8 * LANES * itemsize
    weight_bytes = 2 * (2 * LANES * LANES * 4          # w1, w2 (double-buffered)
                        + 2 * 8 * LANES * 4)           # b1, b2 (tile-padded)
    vmem_need = 2 * 2 * block_bytes + 3 * block_bytes + weight_bytes
    vmem_limit = int(min(_VMEM_BUDGET, max(vmem_need + (4 << 20), 8 << 20)))

    yp = pl.pallas_call(
        mlp_kernel,
        out_shape=jax.ShapeDtypeStruct((n_packed, LANES), x.dtype),
        grid=grid,
        in_specs=[
            pl.BlockSpec((tb8, LANES), lambda i: (i, 0)),     # packed activations
            pl.BlockSpec((LANES, LANES), lambda i: (0, 0)),   # w1 (grid-invariant)
            pl.BlockSpec((1, LANES), lambda i: (0, 0)),       # b1
            pl.BlockSpec((LANES, LANES), lambda i: (0, 0)),   # w2
            pl.BlockSpec((1, LANES), lambda i: (0, 0)),       # b2
        ],
        out_specs=pl.BlockSpec((tb8, LANES), lambda i: (i, 0)),
        compiler_params=pltpu.CompilerParams(
            dimension_semantics=("parallel",),   # batch blocks independent -> 2 TCs on v7x
            vmem_limit_bytes=vmem_limit,
        ),
    )(xp, w1_blk, b1_blk, w2_blk, b2_blk)

    y = yp.reshape(Bp, F)
    return y if Bp == B else y[:B]


def reference_forward(x, w1, b1, w2, b2):
    h = jnp.maximum(x @ w1.T + b1, 0.0)
    return h @ w2.T + b2


if __name__ == "__main__":
    key = jax.random.PRNGKey(0)
    k_x, k_w1, k_b1, k_w2, k_b2 = jax.random.split(key, 5)

    # Deterministic "Linear" params in PyTorch (out_features, in_features) layout.
    bound = 1.0 / jnp.sqrt(F)
    w1 = jax.random.uniform(k_w1, (F, F), minval=-bound, maxval=bound, dtype=jnp.float32)
    b1 = jax.random.uniform(k_b1, (F,), minval=-bound, maxval=bound, dtype=jnp.float32)
    w2 = jax.random.uniform(k_w2, (F, F), minval=-bound, maxval=bound, dtype=jnp.float32)
    b2 = jax.random.uniform(k_b2, (F,), minval=-bound, maxval=bound, dtype=jnp.float32)

    # One-time parameter prep (no transposes/reshapes of weights per call).
    params = jax.block_until_ready(prepare_params(w1, b1, w2, b2))

    # 1) Small batch consistent with the module spec (single grid step).
    B = 8
    x = jax.random.normal(k_x, (B, F), dtype=jnp.float32)
    out = jax.block_until_ready(dummy_model_forward(x, *params))
    ref = reference_forward(x, w1, b1, w2, b2)
    assert out.shape == (B, F)
    assert jnp.allclose(out, ref, atol=1e-4, rtol=1e-4), "mismatch vs reference (B=8)"

    # 2) Ragged batch + multi-step grid with a deliberately small tile
    #    (exercises the <=63-row pad, cdiv grid and partial last block).
    B2 = 300
    x2 = jax.random.normal(k_x, (B2, F), dtype=jnp.float32)
    out2 = jax.block_until_ready(dummy_model_forward(x2, *params, tb_rows=128))
    ref2 = reference_forward(x2, w1, b1, w2, b2)
    assert out2.shape == (B2, F)
    assert jnp.allclose(out2, ref2, atol=1e-4, rtol=1e-4), "mismatch vs reference (B=300)"

    # 3) Default tile path: MIN_GRID_STEPS-way split, partial last block.
    B3 = 5000
    x3 = jax.random.normal(k_x, (B3, F), dtype=jnp.float32)
    out3 = jax.block_until_ready(dummy_model_forward(x3, *params))
    ref3 = reference_forward(x3, w1, b1, w2, b2)
    assert out3.shape == (B3, F)
    assert jnp.allclose(out3, ref3, atol=1e-4, rtol=1e-4), "mismatch vs reference (B=5000)"

    print("KERNEL_OK")
</pallas_src>

<mosaic_0001>
module attributes {stable_mosaic.version = 11 : i64} {
  func.func @mlp_kernel(%arg0: i32, %arg1: memref<8x128xf32, #tpu.memory_space<vmem>>, %arg2: memref<128x128xf32, #tpu.memory_space<vmem>>, %arg3: memref<1x128xf32, #tpu.memory_space<vmem>>, %arg4: memref<128x128xf32, #tpu.memory_space<vmem>>, %arg5: memref<1x128xf32, #tpu.memory_space<vmem>>, %arg6: memref<8x128xf32, #tpu.memory_space<vmem>>) attributes {dimension_semantics = [#tpu.dimension_semantics<parallel>], iteration_bounds = array<i64: 1>, scalar_prefetch = 0 : i64, scratch_operands = 0 : i64, tpu.core_type = #tpu.core_type<tc>, window_params = [{transform_indices = @transform_0, window_bounds = array<i64: 8, 128>}, {pipeline_mode = #tpu.pipeline_mode<synchronous>, transform_indices = @transform_1, window_bounds = array<i64: 128, 128>}, {pipeline_mode = #tpu.pipeline_mode<synchronous>, transform_indices = @transform_2, window_bounds = array<i64: 1, 128>}, {pipeline_mode = #tpu.pipeline_mode<synchronous>, transform_indices = @transform_3, window_bounds = array<i64: 128, 128>}, {pipeline_mode = #tpu.pipeline_mode<synchronous>, transform_indices = @transform_4, window_bounds = array<i64: 1, 128>}, {transform_indices = @transform_5, window_bounds = array<i64: 8, 128>}]} {
    %c0 = arith.constant 0 : index
    %c0_0 = arith.constant 0 : index
    %0 = vector.load %arg1[%c0, %c0_0] : memref<8x128xf32, #tpu.memory_space<vmem>>, vector<8x128xf32>
    %c0_1 = arith.constant 0 : index
    %c0_2 = arith.constant 0 : index
    %1 = vector.load %arg2[%c0_1, %c0_2] : memref<128x128xf32, #tpu.memory_space<vmem>>, vector<128x128xf32>
    %cst = arith.constant dense<0.000000e+00> : vector<8x128xf32>
    %2 = tpu.matmul %0, %1, %cst {dimension_numbers = #tpu.dot_dimension_numbers<[1], [0], [0], [1], [0, 0, 1, 1], [], []>} : vector<8x128xf32>, vector<128x128xf32>, vector<8x128xf32> -> vector<8x128xf32>
    %c0_3 = arith.constant 0 : index
    %c0_4 = arith.constant 0 : index
    %3 = vector.load %arg3[%c0_3, %c0_4] : memref<1x128xf32, #tpu.memory_space<vmem>>, vector<1x128xf32>
    %4 = vector.broadcast %3 : vector<1x128xf32> to vector<8x128xf32>
    %5 = arith.addf %2, %4 : vector<8x128xf32>
    %cst_5 = arith.constant 0.000000e+00 : f32
    %6 = vector.broadcast %cst_5 : f32 to vector<8x128xf32>
    %7 = arith.maximumf %5, %6 : vector<8x128xf32>
    %c0_6 = arith.constant 0 : index
    %c0_7 = arith.constant 0 : index
    %8 = vector.load %arg4[%c0_6, %c0_7] : memref<128x128xf32, #tpu.memory_space<vmem>>, vector<128x128xf32>
    %cst_8 = arith.constant dense<0.000000e+00> : vector<8x128xf32>
    %9 = tpu.matmul %7, %8, %cst_8 {dimension_numbers = #tpu.dot_dimension_numbers<[1], [0], [0], [1], [0, 0, 1, 1], [], []>} : vector<8x128xf32>, vector<128x128xf32>, vector<8x128xf32> -> vector<8x128xf32>
    %c0_9 = arith.constant 0 : index
    %c0_10 = arith.constant 0 : index
    %10 = vector.load %arg5[%c0_9, %c0_10] : memref<1x128xf32, #tpu.memory_space<vmem>>, vector<1x128xf32>
    %11 = vector.broadcast %10 : vector<1x128xf32> to vector<8x128xf32>
    %12 = arith.addf %9, %11 : vector<8x128xf32>
    %c0_11 = arith.constant 0 : index
    %c0_12 = arith.constant 0 : index
    %13 = vector.load %arg6[%c0_11, %c0_12] : memref<8x128xf32, #tpu.memory_space<vmem>>, vector<8x128xf32>
    tpu.vector_store %arg6[%c0_11, %c0_12], %12 {strides = array<i32>} : memref<8x128xf32, #tpu.memory_space<vmem>>, vector<8x128xf32>,
    return
  }
  func.func @transform_0(%arg0: i32) -> (i32, i32) {
    %c0_i32 = arith.constant 0 : i32
    %c0_i32_0 = arith.constant 0 : i32
    return %arg0, %c0_i32 : i32, i32
  }
  func.func @transform_1(%arg0: i32) -> (i32, i32) {
    %c0_i32 = arith.constant 0 : i32
    %c0_i32_0 = arith.constant 0 : i32
    %c0_i32_1 = arith.constant 0 : i32
    return %c0_i32, %c0_i32_0 : i32, i32
  }
  func.func @transform_2(%arg0: i32) -> (i32, i32) {
    %c0_i32 = arith.constant 0 : i32
    %c0_i32_0 = arith.constant 0 : i32
    %c0_i32_1 = arith.constant 0 : i32
    return %c0_i32, %c0_i32_0 : i32, i32
  }
  func.func @transform_3(%arg0: i32) -> (i32, i32) {
    %c0_i32 = arith.constant 0 : i32
    %c0_i32_0 = arith.constant 0 : i32
    %c0_i32_1 = arith.constant 0 : i32
    return %c0_i32, %c0_i32_0 : i32, i32
  }
  func.func @transform_4(%arg0: i32) -> (i32, i32) {
    %c0_i32 = arith.constant 0 : i32
    %c0_i32_0 = arith.constant 0 : i32
    %c0_i32_1 = arith.constant 0 : i32
    return %c0_i32, %c0_i32_0 : i32, i32
  }
  func.func @transform_5(%arg0: i32) -> (i32, i32) {
    %c0_i32 = arith.constant 0 : i32
    %c0_i32_0 = arith.constant 0 : i32
    return %arg0, %c0_i32 : i32, i32
  }
}

</mosaic_0001>

<llo_original>
// kernel: dummy_model_forward.1
$region0: #{dummy_model_forward.1}
  #allocation0 [shape = 'u32[]', space=smem, size = 0x4, offset = 0x4, fixed_abs, tag = 'smem constant byte address 0x4 - core index']
  #allocation1 [shape = 'u32[72,128]{1,0:T(1,128)}', space=vmem, size = 0x9000, scoped, tag = 'internal scratch']
  %s0 = inlined_call_operand.vmem [shape: f32[8,128], index: 0, kind: input, shape index: {}]
  %s1 = inlined_call_operand.vmem [shape: f32[128,128], index: 1, kind: input, shape index: {}]
  %s2 = inlined_call_operand.vmem [shape: f32[1,128], index: 2, kind: input, shape index: {}]
  %s3 = inlined_call_operand.hbm [shape: f32[128,128], index: 3, kind: input, shape index: {}]
  %s4 = inlined_call_operand.vmem [shape: f32[1,128], index: 4, kind: input, shape index: {}]
  %s5 = inlined_call_operand.vmem [shape: f32[8,128], index: 5, kind: output, shape index: {}]
  %s6 = sld [smem:[#allocation0]]
  $region34: #{dummy_model_forward.1} parent=0
    _
  %s8 = ssub.s32 1, %s6
  %s9 = scalar_select 0, %s8, %s6
  $region1: #{dummy_model_forward.1} parent=0
    #allocation2 [shape = 'u8[65536]{0}', space=vmem, size = 0x10000, scoped, tag = 'input window, operand 3, single buffered']
    #allocation3 [shape = 's32[1]{0}', space=sflag, size = 0x4, scoped, tag = 'scoped memory for dummy_model_forward.1']
    %10 = vsyncpa [#allocation3], 0
    // Predicated region
    $region2: #{dummy_model_forward.1} parent=1 // pred_check
      _
    $region3: #{dummy_model_forward.1} parent=1 // pred_check_branch
      %12 = sbr.rel (0) target = $region5
    $region4: #{dummy_model_forward.1} parent=1 // pred_region
      _
    $region5: #{dummy_model_forward.1} parent=1 // pred_fallthru
      _
    // Predicated region
    $region6: #{dummy_model_forward.1} parent=1 // pred_check
      _
    $region7: #{dummy_model_forward.1} parent=1 // pred_check_branch
      %14 = sbr.rel (0) target = $region9
    $region8: #{dummy_model_forward.1} parent=1 // pred_region
      _
    $region9: #{dummy_model_forward.1} parent=1 // pred_fallthru
      _
    // Predicated region
    $region10: #{dummy_model_forward.1} parent=1 // pred_check
      _
    $region11: #{dummy_model_forward.1} parent=1 // pred_check_branch
      %16 = sbr.rel (0) target = $region13
    $region12: #{dummy_model_forward.1} parent=1 // pred_region
      _
    $region13: #{dummy_model_forward.1} parent=1 // pred_fallthru
      _
    // Predicated region
    $region14: #{dummy_model_forward.1} parent=1 // pred_check
      _
    $region15: #{dummy_model_forward.1} parent=1 // pred_check_branch
      %18 = sbr.rel (0) target = $region17
    $region16: #{dummy_model_forward.1} parent=1 // pred_region
      %20 = vsyncadd [#allocation3], 0
      %s21 = sshll.u32 %s3, 4
      %s22 = int_to_ptr.hbm [resolvable:$true] %s21
      %s23 = sshll.u32 [#allocation2], 4
      %s24 = int_to_ptr.vmem [resolvable:$true] %s23
      %29 = dma.hbm_to_vmem [thread:$0]  %s22, 2048, %s24, [#allocation3], 128, 128, 8
    $region17: #{dummy_model_forward.1} parent=1 // pred_fallthru
      _
    // Predicated region
    $region18: #{dummy_model_forward.1} parent=1 // pred_check
      _
    $region19: #{dummy_model_forward.1} parent=1 // pred_check_branch
      %31 = sbr.rel (0) target = $region21
    $region20: #{dummy_model_forward.1} parent=1 // pred_region
      _
    $region21: #{dummy_model_forward.1} parent=1 // pred_fallthru
      _
    // Predicated region
    $region22: #{dummy_model_forward.1} parent=1 // pred_check
      _
    $region23: #{dummy_model_forward.1} parent=1 // pred_check_branch
      %33 = sbr.rel (0) target = $region25
    $region24: #{dummy_model_forward.1} parent=1 // pred_region
      %35 = dma.done [#allocation3], 2048
    $region25: #{dummy_model_forward.1} parent=1 // pred_fallthru
      _
    %v36 = vld [vmem:[%s0] sm:$0xff]
    %v37 = vld [vmem:[%s1] sm:$0xff]
    %v38 = vld [vmem:[%s1 + $0x8] sm:$0xff]
    %v39 = vld [vmem:[%s1 + $0x10] sm:$0xff]
    %v40 = vld [vmem:[%s1 + $0x18] sm:$0xff]
    %v41 = vld [vmem:[%s1 + $0x20] sm:$0xff]
    %v42 = vld [vmem:[%s1 + $0x28] sm:$0xff]
    %v43 = vld [vmem:[%s1 + $0x30] sm:$0xff]
    %v44 = vld [vmem:[%s1 + $0x38] sm:$0xff]
    %v45 = vld [vmem:[%s1 + $0x40] sm:$0xff]
    %v46 = vld [vmem:[%s1 + $0x48] sm:$0xff]
    %v47 = vld [vmem:[%s1 + $0x50] sm:$0xff]
    %v48 = vld [vmem:[%s1 + $0x58] sm:$0xff]
    %v49 = vld [vmem:[%s1 + $0x60] sm:$0xff]
    %v50 = vld [vmem:[%s1 + $0x68] sm:$0xff]
    %v51 = vld [vmem:[%s1 + $0x70] sm:$0xff]
    %v52 = vld [vmem:[%s1 + $0x78] sm:$0xff]
    %v53 = vld [vmem:[%s2] sm:$0x1]
    %v55 = vperm.slane %v53, 0
    %57 = vmatpush.msra.mxu0 %v52
    %58 = vmatpush.msra.mxu0 %v51
    %59 = vmatpush.msra.mxu0 %v50
    %60 = vmatpush.msra.mxu0 %v49
    %61 = vmatpush.msra.mxu0 %v48
    %62 = vmatpush.msra.mxu0 %v47
    %63 = vmatpush.msra.mxu0 %v46
    %64 = vmatpush.msra.mxu0 %v45
    %65 = vmatpush.msra.mxu0 %v44
    %66 = vmatpush.msra.mxu0 %v43
    %67 = vmatpush.msra.mxu0 %v42
    %68 = vmatpush.msra.mxu0 %v41
    %69 = vmatpush.msra.mxu0 %v40
    %70 = vmatpush.msra.mxu0 %v39
    %71 = vmatpush.msra.mxu0 %v38
    %72 = vmatpush.msra.mxu0 %v37
    %73 = vmatmul.f32.gmra.mxu0 %v36
    %v74 = vpop.f32.mrf.mxu0
    %v75 = vadd.f32 %v55, %v74
    %76 = vdwg.mxu0
    %v77 = vmax.f32 %v75, 0.0
    %v78 = vld [vmem:[#allocation2] sm:$0xff]
    %v79 = vld [vmem:[#allocation2 + $0x8] sm:$0xff]
    %v80 = vld [vmem:[#allocation2 + $0x10] sm:$0xff]
    %v81 = vld [vmem:[#allocation2 + $0x18] sm:$0xff]
    %v82 = vld [vmem:[#allocation2 + $0x20] sm:$0xff]
    %v83 = vld [vmem:[#allocation2 + $0x28] sm:$0xff]
    %v84 = vld [vmem:[#allocation2 + $0x30] sm:$0xff]
    %v85 = vld [vmem:[#allocation2 + $0x38] sm:$0xff]
    %v86 = vld [vmem:[#allocation2 + $0x40] sm:$0xff]
    %v87 = vld [vmem:[#allocation2 + $0x48] sm:$0xff]
    %v88 = vld [vmem:[#allocation2 + $0x50] sm:$0xff]
    %v89 = vld [vmem:[#allocation2 + $0x58] sm:$0xff]
    %v90 = vld [vmem:[#allocation2 + $0x60] sm:$0xff]
    %v91 = vld [vmem:[#allocation2 + $0x68] sm:$0xff]
    %v92 = vld [vmem:[#allocation2 + $0x70] sm:$0xff]
    %v93 = vld [vmem:[#allocation2 + $0x78] sm:$0xff]
    %v94 = vld [vmem:[%s4] sm:$0x1]
    %v96 = vperm.slane %v94, 0
    %98 = vmatpush.msra.mxu0 %v93
    %99 = vmatpush.msra.mxu0 %v92
    %100 = vmatpush.msra.mxu0 %v91
    %101 = vmatpush.msra.mxu0 %v90
    %102 = vmatpush.msra.mxu0 %v89
    %103 = vmatpush.msra.mxu0 %v88
    %104 = vmatpush.msra.mxu0 %v87
    %105 = vmatpush.msra.mxu0 %v86
    %106 = vmatpush.msra.mxu0 %v85
    %107 = vmatpush.msra.mxu0 %v84
    %108 = vmatpush.msra.mxu0 %v83
    %109 = vmatpush.msra.mxu0 %v82
    %110 = vmatpush.msra.mxu0 %v81
    %111 = vmatpush.msra.mxu0 %v80
    %112 = vmatpush.msra.mxu0 %v79
    %113 = vmatpush.msra.mxu0 %v78
    %114 = vmatmul.f32.gmra.mxu0 %v77
    %v115 = vpop.f32.mrf.mxu0
    %v116 = vadd.f32 %v96, %v115
    %117 = vdwg.mxu0
    %118 = vst [vmem:[%s5] sm:$0xff] %v116
    // Predicated region
    $region26: #{dummy_model_forward.1} parent=1 // pred_check
      _
    $region27: #{dummy_model_forward.1} parent=1 // pred_check_branch
      %120 = sbr.rel (0) target = $region29
    $region28: #{dummy_model_forward.1} parent=1 // pred_region
      _
    $region29: #{dummy_model_forward.1} parent=1 // pred_fallthru
      _
    // Predicated region
    $region30: #{dummy_model_forward.1} parent=1 // pred_check
      _
    $region31: #{dummy_model_forward.1} parent=1 // pred_check_branch
      %122 = sbr.rel (0) target = $region33
    $region32: #{dummy_model_forward.1} parent=1 // pred_region
      _
    $region33: #{dummy_model_forward.1} parent=1 // pred_fallthru
      _
    %123 = vsyncpa [#allocation3], 1

</llo_original>
